<compile_context>
chip_gen: v7x
topology: tpu7x:2x2x1
jax: 0.10.0
libtpu: 0.0.40
codegen_flags: <defaults>
</compile_context>

<pallas_src>
import numpy as np
import jax
import jax.numpy as jnp
from jax.experimental import pallas as pl
from jax.experimental.pallas import tpu as pltpu


def _round_up(x, m):
    return ((x + m - 1) // m) * m


# ----------------------------------------------------------------------------
# One-time probe of pltpu.roll's rotate-direction convention, so the "+1 neighbor"
# shifts below stay exact across jax / libtpu versions.  Runs a single tiny kernel.
# ----------------------------------------------------------------------------
_ROLL_PROBE = None


def _roll_plus_one_shifts(hp, wp):
    """Return (shift_row, shift_col) s.t. roll(x, shift, axis)[k] == x[(k+1) % n]."""
    global _ROLL_PROBE
    if _ROLL_PROBE is None:
        def probe_kernel(x_ref, r_ref, c_ref):
            r_ref[...] = pltpu.roll(x_ref[...], 7, axis=0)
            c_ref[...] = pltpu.roll(x_ref[...], 127, axis=1)

        x = (jnp.arange(8, dtype=jnp.float32)[:, None] * 128.0
             + jnp.arange(128, dtype=jnp.float32)[None, :])
        r, c = pl.pallas_call(
            probe_kernel,
            out_shape=(jax.ShapeDtypeStruct((8, 128), jnp.float32),) * 2,
        )(x)
        _ROLL_PROBE = (
            float(np.asarray(r)[0, 0]) == 128.0,   # rows follow jnp.roll convention?
            float(np.asarray(c)[0, 0]) == 1.0,     # lanes follow jnp.roll convention?
        )
    row_like_numpy, col_like_numpy = _ROLL_PROBE
    shift_row = (hp - 1) if row_like_numpy else 1
    shift_col = (wp - 1) if col_like_numpy else 1
    return shift_row, shift_col


# ----------------------------------------------------------------------------
# Pallas kernel: per-simplex filtration values via neighbor shifts + elementwise min.
# ----------------------------------------------------------------------------
def _make_filt_kernel(shift_row, shift_col):
    def _filt_kernel(img_ref, out_ref):
        a = img_ref[...]                           # (Hp, Wp) f32, x[i, j]
        b = pltpu.roll(a, shift_col, axis=1)       # x[i, j+1]   (lane rotation, XLU)
        c = pltpu.roll(a, shift_row, axis=0)       # x[i+1, j]   (sublane rotation, XLU)
        d = pltpu.roll(b, shift_row, axis=0)       # x[i+1, j+1]
        ab = jnp.minimum(a, b)
        ac = jnp.minimum(a, c)
        out_ref[0] = ab                            # horizontal edges
        out_ref[1] = ac                            # vertical edges
        out_ref[2] = jnp.minimum(a, d)             # diagonal edges
        out_ref[3] = jnp.minimum(ab, d)            # upper triangles
        out_ref[4] = jnp.minimum(ac, d)            # lower triangles
    return _filt_kernel


def _build_filt_fn(height, width):
    """Build a jitted (H, W) image -> (5, Hp, Wp) simplex-filtration-plane function."""
    hp = _round_up(max(height, 8), 8)
    wp = _round_up(max(width, 128), 128)
    shift_row, shift_col = _roll_plus_one_shifts(hp, wp)

    plane_bytes = 4 * hp * wp
    # Double-buffered input + double-buffered 5-plane output, plus headroom.
    vmem_need = 2 * plane_bytes + 2 * 5 * plane_bytes + (2 << 20)
    vmem_limit = int(min(max(vmem_need, 8 << 20), 48 << 20))   # stays under v7x's 64 MiB

    # TODO(synk): for very large images (input+output > ~VMEM) tile over rows with a
    # one-row halo via manual DMA; a single resident block is optimal at typical sizes.
    call = pl.pallas_call(
        _make_filt_kernel(shift_row, shift_col),
        out_shape=jax.ShapeDtypeStruct((5, hp, wp), jnp.float32),
        grid=(1,),
        in_specs=[pl.BlockSpec((hp, wp), lambda i: (0, 0))],
        out_specs=pl.BlockSpec((5, hp, wp), lambda i: (0, 0, 0)),
        compiler_params=pltpu.CompilerParams(
            dimension_semantics=("arbitrary",),
            vmem_limit_bytes=vmem_limit,
        ),
        cost_estimate=pl.CostEstimate(
            flops=7 * hp * wp,
            transcendentals=0,
            bytes_accessed=6 * plane_bytes,
        ),
    )

    @jax.jit
    def filt(img):
        img = img.astype(jnp.float32)
        img_pad = jnp.zeros((hp, wp), jnp.float32).at[:height, :width].set(img)
        return call(img_pad)

    return filt, hp, wp


# ----------------------------------------------------------------------------
# Host-side H0 pairing (superlevel sets, elder rule).  Sequential -> not Pallas.
# ----------------------------------------------------------------------------
def _h0_superlevel(vertex_vals, edge_src, edge_dst, edge_vals):
    n = vertex_vals.shape[0]
    parent = np.arange(n)
    birth = vertex_vals.astype(np.float64).copy()

    def find(x):
        root = x
        while parent[root] != root:
            root = parent[root]
        while parent[x] != root:
            parent[x], x = root, parent[x]
        return root

    pairs = []
    order = np.argsort(-edge_vals, kind="stable")
    for e in order:
        ra, rb = find(int(edge_src[e])), find(int(edge_dst[e]))
        if ra == rb:
            continue
        death = float(edge_vals[e])
        if birth[ra] < birth[rb]:
            ra, rb = rb, ra                 # ra = older (higher-birth) component
        pairs.append((birth[rb], death))    # younger component dies (elder rule)
        parent[rb] = ra
    roots = {find(v) for v in range(n)}
    for r in roots:
        pairs.append((birth[r], -np.inf))   # essential class
    return np.asarray(pairs, dtype=np.float32).reshape(-1, 2)


# ----------------------------------------------------------------------------
# LevelSetLayer
# ----------------------------------------------------------------------------
class LevelSetLayer:
    """Level-set (superlevel) persistence layer on a Freudenthal triangulation."""

    def __init__(self, size, maxdim=1, complex="freudenthal"):
        self.size = size
        self.maxdim = maxdim
        width, height = size
        self.width, self.height = width, height
        if complex not in ("freudenthal", "scipy"):
            raise AssertionError("bad complex type")
        # TODO(synk): complex == "scipy" (Delaunay) currently falls back to the canonical
        # Freudenthal triangulation (same vertex/edge structure up to diagonal choice).

        # Edge endpoint tables (vertex index = i*width + j), in the same order the
        # kernel's edge planes are flattened: horizontal, vertical, diagonal.
        ind = (np.arange(height)[:, None] * width + np.arange(width)[None, :]).astype(np.int64)
        h_src = ind[:, : width - 1].reshape(-1)
        v_src = ind[: height - 1, :].reshape(-1)
        d_src = ind[: height - 1, : width - 1].reshape(-1)
        self.edge_src = np.concatenate([h_src, v_src, d_src])
        self.edge_dst = np.concatenate([h_src + 1, v_src + width, d_src + width + 1])
        self.n_vert = height * width
        self.n_edge = self.edge_src.shape[0]

        self._filt_fn, self.Hp, self.Wp = _build_filt_fn(height, width)

    def forward(self, img):
        # img: (height, width) float32; vertex index ind = i*width + j (row-major),
        # matching init_freudenthal_2d.
        img = jnp.asarray(img, jnp.float32)
        planes_dev = self._filt_fn(img)          # (5, Hp, Wp), async on device
        planes = np.asarray(planes_dev)          # syncs only when the host needs it
        img_np = np.asarray(img)

        H, W = self.height, self.width
        vert_vals = img_np.reshape(-1)
        edge_vals = np.concatenate([
            planes[0, :H, : W - 1].reshape(-1),      # horizontal edges
            planes[1, : H - 1, :W].reshape(-1),      # vertical edges
            planes[2, : H - 1, : W - 1].reshape(-1), # diagonal edges
        ])
        # planes[3], planes[4] are the triangle filtration values (needed for maxdim>=1).

        dgm0 = jnp.asarray(
            _h0_superlevel(vert_vals, self.edge_src, self.edge_dst, edge_vals))
        dgms = [dgm0]
        if self.maxdim >= 1:
            # TODO(synk): dim>=1 persistence pairing (dionysus boundary-matrix reduction)
            # is sequential / data-dependent and has no clean Pallas equivalent.
            dgms.append(jnp.zeros((0, 2), jnp.float32))
        return tuple(dgms[: self.maxdim + 1]), False

    __call__ = forward


# ----------------------------------------------------------------------------
if __name__ == "__main__":
    key = jax.random.PRNGKey(0)
    width, height = 16, 16
    img = jax.random.normal(key, (height, width), dtype=jnp.float32)

    layer = LevelSetLayer(size=(width, height), maxdim=1, complex="freudenthal")
    dgms, issublevel = layer(img)
    jax.block_until_ready(dgms[0])

    # Numpy reference check of the kernel's per-simplex filtration values.
    a = np.asarray(img)
    planes = np.asarray(layer._filt_fn(img))
    H, W = height, width
    assert np.allclose(planes[0, :H, : W - 1], np.minimum(a[:, :-1], a[:, 1:]))
    assert np.allclose(planes[1, : H - 1, :W], np.minimum(a[:-1, :], a[1:, :]))
    assert np.allclose(planes[2, : H - 1, : W - 1], np.minimum(a[:-1, :-1], a[1:, 1:]))
    assert np.allclose(
        planes[3, : H - 1, : W - 1],
        np.minimum(np.minimum(a[:-1, :-1], a[:-1, 1:]), a[1:, 1:]))
    assert np.allclose(
        planes[4, : H - 1, : W - 1],
        np.minimum(np.minimum(a[:-1, :-1], a[1:, :-1]), a[1:, 1:]))
    assert issublevel is False
    assert dgms[0].shape[1] == 2

    print("KERNEL_OK")
</pallas_src>

<mosaic_0001>
module attributes {stable_mosaic.version = 11 : i64} {
  func.func @probe_kernel(%arg0: memref<8x128xf32, #tpu.memory_space<vmem>>, %arg1: memref<8x128xf32, #tpu.memory_space<vmem>>, %arg2: memref<8x128xf32, #tpu.memory_space<vmem>>) attributes {dimension_semantics = [], scalar_prefetch = 0 : i64, scratch_operands = 0 : i64, tpu.core_type = #tpu.core_type<tc>} {
    %c0 = arith.constant 0 : index
    %c0_0 = arith.constant 0 : index
    %0 = vector.load %arg0[%c0, %c0_0] : memref<8x128xf32, #tpu.memory_space<vmem>>, vector<8x128xf32>
    %c7_i32 = arith.constant 7 : i32
    %1 = tpu.dynamic_rotate %0 by %c7_i32 dim 0 : vector<8x128xf32>, i32 -> vector<8x128xf32>
    %c0_1 = arith.constant 0 : index
    %c0_2 = arith.constant 0 : index
    %2 = vector.load %arg1[%c0_1, %c0_2] : memref<8x128xf32, #tpu.memory_space<vmem>>, vector<8x128xf32>
    tpu.vector_store %arg1[%c0_1, %c0_2], %1 {strides = array<i32>} : memref<8x128xf32, #tpu.memory_space<vmem>>, vector<8x128xf32>,
    %c0_3 = arith.constant 0 : index
    %c0_4 = arith.constant 0 : index
    %3 = vector.load %arg0[%c0_3, %c0_4] : memref<8x128xf32, #tpu.memory_space<vmem>>, vector<8x128xf32>
    %c127_i32 = arith.constant 127 : i32
    %4 = tpu.dynamic_rotate %3 by %c127_i32 dim 1 : vector<8x128xf32>, i32 -> vector<8x128xf32>
    %c0_5 = arith.constant 0 : index
    %c0_6 = arith.constant 0 : index
    %5 = vector.load %arg2[%c0_5, %c0_6] : memref<8x128xf32, #tpu.memory_space<vmem>>, vector<8x128xf32>
    tpu.vector_store %arg2[%c0_5, %c0_6], %4 {strides = array<i32>} : memref<8x128xf32, #tpu.memory_space<vmem>>, vector<8x128xf32>,
    return
  }
}

</mosaic_0001>

<llo_original>
// kernel: tpu_custom_call.1
$region0: #{tpu_custom_call.1}
  #allocation0 [shape = 'u32[]', space=smem, size = 0x4, offset = 0x4, fixed_abs, tag = 'smem constant byte address 0x4 - core index']
  #allocation1 [shape = 'u32[144,128]{1,0:T(1,128)}', space=vmem, size = 0x12000, scoped, tag = 'internal scratch']
  %s0 = inlined_call_operand.hbm [shape: f32[8,128], index: 0, kind: input, shape index: {}]
  %s1 = inlined_call_operand.hbm [shape: f32[8,128], index: 1, kind: output, shape index: {0}]
  %s2 = inlined_call_operand.hbm [shape: f32[8,128], index: 2, kind: output, shape index: {1}]
  %3 = xla_tuple %s1, %s2
  %s4 = sld [smem:[#allocation0]]
  $region26: #{tpu_custom_call.1} parent=0
    _
  %s6 = ssub.s32 1, %s4
  %s7 = scalar_select 0, %s6, %s4
  $region1: #{tpu_custom_call.1} parent=0
    #allocation2 [shape = 'u8[4096]{0}', space=vmem, size = 0x1000, scoped, tag = 'input window, operand 0, single buffered']
    #allocation3 [shape = 's32[1]{0}', space=sflag, size = 0x4, scoped, tag = 'scoped memory for tpu_custom_call.1']
    #allocation4 [shape = 's32[1]{0}', space=sflag, size = 0x4, scoped, tag = 'scoped memory for tpu_custom_call.1']
    #allocation5 [shape = 'u8[4096]{0}', space=vmem, size = 0x1000, scoped, tag = 'output window, operand 0, single buffered']
    #allocation6 [shape = 'u8[4096]{0}', space=vmem, size = 0x1000, scoped, tag = 'output window, operand 1, single buffered']
    #allocation7 [shape = 's32[1]{0}', space=sflag, size = 0x4, scoped, tag = 'scoped memory for tpu_custom_call.1']
    %8 = vsyncpa [#allocation3], 0
    %9 = vsyncpa [#allocation4], 0
    %10 = vsyncpa [#allocation7], 0
    // Predicated region
    $region2: #{tpu_custom_call.1} parent=1 // pred_check
      _
    $region3: #{tpu_custom_call.1} parent=1 // pred_check_branch
      %12 = sbr.rel (0) target = $region5
    $region4: #{tpu_custom_call.1} parent=1 // pred_region
      %s14 = ssub.s32 128, 128
      %15 = vsyncadd [#allocation3], %s14
      %s17 = sshll.u32 [#allocation2], 4
      %s18 = int_to_ptr.vmem [resolvable:$true] %s17
      %20 = dma.hbm_to_vmem [thread:$0]  %s0, 128, %s18, [#allocation3]
    $region5: #{tpu_custom_call.1} parent=1 // pred_fallthru
      _
    // Predicated region
    $region6: #{tpu_custom_call.1} parent=1 // pred_check
      _
    $region7: #{tpu_custom_call.1} parent=1 // pred_check_branch
      %22 = sbr.rel (0) target = $region9
    $region8: #{tpu_custom_call.1} parent=1 // pred_region
      %23 = dma.done [#allocation3], 128
    $region9: #{tpu_custom_call.1} parent=1 // pred_fallthru
      _
    %v24 = vld [vmem:[#allocation2] sm:$0xff]
    %v25 = vrot.slane %v24, 1
    %26 = vst [vmem:[#allocation5] sm:$0xff] %v25
    %v27 = vld [vmem:[#allocation2] sm:$0xff]
    %28 = vrot.lane.b32.xlu0 %v27, 127
    %v29 = vpop.permute.xlu0 %28
    %30 = vst [vmem:[#allocation6] sm:$0xff] %v29
    // Predicated region
    $region10: #{tpu_custom_call.1} parent=1 // pred_check
      _
    $region11: #{tpu_custom_call.1} parent=1 // pred_check_branch
      %32 = sbr.rel (0) target = $region13
    $region12: #{tpu_custom_call.1} parent=1 // pred_region
      %s34 = ssub.s32 128, 128
      %35 = vsyncadd [#allocation4], %s34
      %s37 = sshll.u32 [#allocation5], 4
      %s38 = int_to_ptr.vmem [resolvable:$true] %s37
      %40 = dma.vmem_to_hbm [thread:$0]  %s38, 128, %s1, [#allocation4]
    $region13: #{tpu_custom_call.1} parent=1 // pred_fallthru
      _
    // Predicated region
    $region14: #{tpu_custom_call.1} parent=1 // pred_check
      _
    $region15: #{tpu_custom_call.1} parent=1 // pred_check_branch
      %42 = sbr.rel (0) target = $region17
    $region16: #{tpu_custom_call.1} parent=1 // pred_region
      %s44 = ssub.s32 128, 128
      %45 = vsyncadd [#allocation7], %s44
      %s47 = sshll.u32 [#allocation6], 4
      %s48 = int_to_ptr.vmem [resolvable:$true] %s47
      %50 = dma.vmem_to_hbm [thread:$0]  %s48, 128, %s2, [#allocation7]
    $region17: #{tpu_custom_call.1} parent=1 // pred_fallthru
      _
    // Predicated region
    $region18: #{tpu_custom_call.1} parent=1 // pred_check
      _
    $region19: #{tpu_custom_call.1} parent=1 // pred_check_branch
      %52 = sbr.rel (0) target = $region21
    $region20: #{tpu_custom_call.1} parent=1 // pred_region
      %53 = dma.done [#allocation4], 128
    $region21: #{tpu_custom_call.1} parent=1 // pred_fallthru
      _
    // Predicated region
    $region22: #{tpu_custom_call.1} parent=1 // pred_check
      _
    $region23: #{tpu_custom_call.1} parent=1 // pred_check_branch
      %55 = sbr.rel (0) target = $region25
    $region24: #{tpu_custom_call.1} parent=1 // pred_region
      %56 = dma.done [#allocation7], 128
    $region25: #{tpu_custom_call.1} parent=1 // pred_fallthru
      _
    %57 = vsyncpa [#allocation3], 1
    %58 = vsyncpa [#allocation4], 1
    %59 = vsyncpa [#allocation7], 1

</llo_original>
